<compile_context>
chip_gen: v5e
topology: v5e:2x2
jax: 0.10.0
libtpu: 0.0.40
codegen_flags: <defaults>
</compile_context>

<pallas_src>
import jax
import jax.numpy as jnp
from jax.experimental import pallas as pl
from jax.experimental.pallas import tpu as pltpu


def _packed_mlp_kernel(x_ref, w1_ref, b1_ref, w2_ref, b2_ref, o_ref):
    # relu(x @ W1_blk + b1_blk) @ W2_blk + b2_blk, all f32, MXU accumulation
    # in f32.  Biases are (1, *) blocks and broadcast over rows on the VPU.
    x = x_ref[...]
    h = jnp.dot(x, w1_ref[...], preferred_element_type=jnp.float32)
    h = jnp.maximum(h + b1_ref[...], 0.0)
    out = jnp.dot(h, w2_ref[...], preferred_element_type=jnp.float32) + b2_ref[...]
    o_ref[...] = out.astype(o_ref.dtype)


def _block_diag(w, p):
    """(in, out) -> (p*in, p*out) block-diagonal with p copies of w."""
    in_d, out_d = w.shape
    eye = jnp.eye(p, dtype=w.dtype)
    return jnp.einsum("ab,ij->aibj", eye, w).reshape(p * in_d, p * out_d)


def forward_input_update_nn(x, w1, b1, w2, b2, *, pack=16, tile_m=2048,
                            vmem_limit_bytes=40 * 1024 * 1024):
    """relu(x @ w1 + b1) @ w2 + b2 with lane-dense row packing.

    x: (N, F), w1: (F, H), b1: (1, H), w2: (H, E), b2: (1, E) -> (N, E).
    Weights are stored pre-transposed vs. PyTorch nn.Linear ((in, out)).
    `pack`=16 makes F*pack=256, H*pack=512, E*pack=128 for F=16/H=32/E=8.
    `tile_m` is in *packed* rows (1 packed row = `pack` logical rows).
    """
    N, F = x.shape
    H = w1.shape[1]
    E = w2.shape[1]
    out_dtype = x.dtype

    b1 = b1.reshape(1, H).astype(jnp.float32)
    b2 = b2.reshape(1, E).astype(jnp.float32)

    M = N // pack          # packed rows handled by the Pallas kernel
    r = N - M * pack       # < pack remainder rows (plain XLA, tiny)

    outs = []
    if M > 0:
        Fp, Hp, Ep = pack * F, pack * H, pack * E

        # Packed parameters are tiny (~0.8 MiB total); under jit they are
        # constant-folded / hoisted, so rebuilding them here is negligible.
        w1_blk = _block_diag(w1.astype(jnp.float32), pack)
        w2_blk = _block_diag(w2.astype(jnp.float32), pack)
        b1_blk = jnp.tile(b1, (1, pack))
        b2_blk = jnp.tile(b2, (1, pack))

        # Contiguity-preserving reshape: (M*pack, F) row-major == (M, pack*F).
        # No data movement in HBM.  (The prefix slice is a no-op when r == 0.)
        x_pk = x[: M * pack].reshape(M, Fp)

        # Tile clamp: either one exact full-extent block, or a multiple-of-8
        # block; a non-dividing last block is handled by Pallas' clipped DMAs
        # (no padded HBM copy, row-independent compute makes it safe).
        tile = int(tile_m)
        if tile >= M:
            tile = M
        else:
            tile = max(8, (tile // 8) * 8)
        grid = (pl.cdiv(M, tile),)

        cost = pl.CostEstimate(
            flops=2 * M * (Fp * Hp + Hp * Ep),
            bytes_accessed=4 * (M * Fp + M * Ep + Fp * Hp + Hp * Ep + Hp + Ep),
            transcendentals=0,
        )

        out_pk = pl.pallas_call(
            _packed_mlp_kernel,
            out_shape=jax.ShapeDtypeStruct((M, Ep), out_dtype),
            grid=grid,
            in_specs=[
                # x: one lane-dense packed row tile per grid step
                # (double-buffered by the Pallas pipeline).
                pl.BlockSpec((tile, Fp), lambda i: (i, 0)),
                # Weights / biases: constant index_map -> VMEM-resident.
                pl.BlockSpec((Fp, Hp), lambda i: (0, 0)),
                pl.BlockSpec((1, Hp), lambda i: (0, 0)),
                pl.BlockSpec((Hp, Ep), lambda i: (0, 0)),
                pl.BlockSpec((1, Ep), lambda i: (0, 0)),
            ],
            # Ep = 128 lanes -> unmasked full-width stores (resolves the old
            # E=8 masked-store TODO).
            out_specs=pl.BlockSpec((tile, Ep), lambda i: (i, 0)),
            compiler_params=pltpu.CompilerParams(
                dimension_semantics=("parallel",),   # shard rows across TCs on v7x
                vmem_limit_bytes=vmem_limit_bytes,
            ),
            cost_estimate=cost,
        )(x_pk, w1_blk, b1_blk, w2_blk, b2_blk)

        outs.append(out_pk.reshape(M * pack, E))

    if r > 0:
        # < pack rows of remainder: cheaper as three tiny XLA ops than as a
        # padded copy of the whole input or an extra kernel launch.
        x_tail = x[M * pack:]
        tail = jnp.maximum(x_tail @ w1 + b1, 0.0) @ w2 + b2
        outs.append(tail.astype(out_dtype))

    if len(outs) == 1:
        return outs[0]
    return jnp.concatenate(outs, axis=0)


def init_params(key, feature_vector_size, hidden_layer_size, embedding_vector_size,
                dtype=jnp.float32):
    """PyTorch nn.Linear-style init (uniform +-1/sqrt(fan_in)); weights are
    returned already transposed to (in, out)."""
    k1, k2, k3, k4 = jax.random.split(key, 4)
    bound1 = 1.0 / (feature_vector_size ** 0.5)
    bound2 = 1.0 / (hidden_layer_size ** 0.5)
    w1 = jax.random.uniform(k1, (feature_vector_size, hidden_layer_size),
                            dtype, minval=-bound1, maxval=bound1)
    b1 = jax.random.uniform(k2, (1, hidden_layer_size),
                            dtype, minval=-bound1, maxval=bound1)
    w2 = jax.random.uniform(k3, (hidden_layer_size, embedding_vector_size),
                            dtype, minval=-bound2, maxval=bound2)
    b2 = jax.random.uniform(k4, (1, embedding_vector_size),
                            dtype, minval=-bound2, maxval=bound2)
    return w1, b1, w2, b2


if __name__ == "__main__":
    # Module shapes: feature_vector_size=16, hidden_layer_size=32,
    # embedding_vector_size=8.
    F, H, E = 16, 32, 8
    key = jax.random.PRNGKey(0)
    kx1, kx2, kx3, kp = jax.random.split(key, 4)
    w1, b1, w2, b2 = init_params(kp, F, H, E)

    def ref_fn(x):
        return jnp.maximum(x @ w1 + b1, 0.0) @ w2 + b2

    fwd = jax.jit(forward_input_update_nn,
                  static_argnames=("pack", "tile_m", "vmem_limit_bytes"))

    # 1) Packed multi-tile path with a non-dividing last block AND a <16-row
    #    tail: N=300 -> 18 packed rows, grid=3 at tile_m=8, tail of 12 rows.
    N1 = 300
    x1 = jax.random.normal(kx1, (N1, F), jnp.float32)
    out1 = jax.block_until_ready(fwd(x1, w1, b1, w2, b2, tile_m=8))
    assert out1.shape == (N1, E)
    assert jnp.allclose(out1, ref_fn(x1), atol=1e-4, rtol=1e-4), "N=300 mismatch"

    # 2) Exactly divisible N: single pallas_call, no tail, default tile.
    N2 = 256
    x2 = jax.random.normal(kx2, (N2, F), jnp.float32)
    out2 = jax.block_until_ready(fwd(x2, w1, b1, w2, b2))
    assert out2.shape == (N2, E)
    assert jnp.allclose(out2, ref_fn(x2), atol=1e-4, rtol=1e-4), "N=256 mismatch"

    # 3) Tiny N < pack (the module's typical 8-node input): pure tail path.
    N3 = 8
    x3 = jax.random.normal(kx3, (N3, F), jnp.float32)
    out3 = jax.block_until_ready(fwd(x3, w1, b1, w2, b2))
    assert out3.shape == (N3, E)
    assert jnp.allclose(out3, ref_fn(x3), atol=1e-4, rtol=1e-4), "N=8 mismatch"

    print("KERNEL_OK")
</pallas_src>

<mosaic_0001>
module attributes {stable_mosaic.version = 11 : i64} {
  func.func @_packed_mlp_kernel(%arg0: i32, %arg1: memref<8x256xf32, #tpu.memory_space<vmem>>, %arg2: memref<256x512xf32, #tpu.memory_space<vmem>>, %arg3: memref<1x512xf32, #tpu.memory_space<vmem>>, %arg4: memref<512x128xf32, #tpu.memory_space<vmem>>, %arg5: memref<1x128xf32, #tpu.memory_space<vmem>>, %arg6: memref<8x128xf32, #tpu.memory_space<vmem>>) attributes {dimension_semantics = [#tpu.dimension_semantics<parallel>], iteration_bounds = array<i64: 3>, scalar_prefetch = 0 : i64, scratch_operands = 0 : i64, tpu.core_type = #tpu.core_type<tc>, window_params = [{transform_indices = @transform_0, window_bounds = array<i64: 8, 256>}, {pipeline_mode = #tpu.pipeline_mode<synchronous>, transform_indices = @transform_1, window_bounds = array<i64: 256, 512>}, {pipeline_mode = #tpu.pipeline_mode<synchronous>, transform_indices = @transform_2, window_bounds = array<i64: 1, 512>}, {pipeline_mode = #tpu.pipeline_mode<synchronous>, transform_indices = @transform_3, window_bounds = array<i64: 512, 128>}, {pipeline_mode = #tpu.pipeline_mode<synchronous>, transform_indices = @transform_4, window_bounds = array<i64: 1, 128>}, {transform_indices = @transform_5, window_bounds = array<i64: 8, 128>}]} {
    %c0 = arith.constant 0 : index
    %c0_0 = arith.constant 0 : index
    %0 = vector.load %arg1[%c0, %c0_0] : memref<8x256xf32, #tpu.memory_space<vmem>>, vector<8x256xf32>
    %c0_1 = arith.constant 0 : index
    %c0_2 = arith.constant 0 : index
    %1 = vector.load %arg2[%c0_1, %c0_2] : memref<256x512xf32, #tpu.memory_space<vmem>>, vector<256x512xf32>
    %cst = arith.constant dense<0.000000e+00> : vector<8x512xf32>
    %2 = tpu.matmul %0, %1, %cst {dimension_numbers = #tpu.dot_dimension_numbers<[1], [0], [0], [1], [0, 0, 1, 1], [], []>} : vector<8x256xf32>, vector<256x512xf32>, vector<8x512xf32> -> vector<8x512xf32>
    %c0_3 = arith.constant 0 : index
    %c0_4 = arith.constant 0 : index
    %3 = vector.load %arg3[%c0_3, %c0_4] : memref<1x512xf32, #tpu.memory_space<vmem>>, vector<1x512xf32>
    %4 = vector.broadcast %3 : vector<1x512xf32> to vector<8x512xf32>
    %5 = arith.addf %2, %4 : vector<8x512xf32>
    %cst_5 = arith.constant 0.000000e+00 : f32
    %6 = vector.broadcast %cst_5 : f32 to vector<8x512xf32>
    %7 = arith.maximumf %5, %6 : vector<8x512xf32>
    %c0_6 = arith.constant 0 : index
    %c0_7 = arith.constant 0 : index
    %8 = vector.load %arg4[%c0_6, %c0_7] : memref<512x128xf32, #tpu.memory_space<vmem>>, vector<512x128xf32>
    %cst_8 = arith.constant dense<0.000000e+00> : vector<8x128xf32>
    %9 = tpu.matmul %7, %8, %cst_8 {dimension_numbers = #tpu.dot_dimension_numbers<[1], [0], [0], [1], [0, 0, 1, 1], [], []>} : vector<8x512xf32>, vector<512x128xf32>, vector<8x128xf32> -> vector<8x128xf32>
    %c0_9 = arith.constant 0 : index
    %c0_10 = arith.constant 0 : index
    %10 = vector.load %arg5[%c0_9, %c0_10] : memref<1x128xf32, #tpu.memory_space<vmem>>, vector<1x128xf32>
    %11 = vector.broadcast %10 : vector<1x128xf32> to vector<8x128xf32>
    %12 = arith.addf %9, %11 : vector<8x128xf32>
    %c0_11 = arith.constant 0 : index
    %c0_12 = arith.constant 0 : index
    %13 = vector.load %arg6[%c0_11, %c0_12] : memref<8x128xf32, #tpu.memory_space<vmem>>, vector<8x128xf32>
    tpu.vector_store %arg6[%c0_11, %c0_12], %12 {strides = array<i32>} : memref<8x128xf32, #tpu.memory_space<vmem>>, vector<8x128xf32>,
    return
  }
  func.func @transform_0(%arg0: i32) -> (i32, i32) {
    %c0_i32 = arith.constant 0 : i32
    %c0_i32_0 = arith.constant 0 : i32
    return %arg0, %c0_i32 : i32, i32
  }
  func.func @transform_1(%arg0: i32) -> (i32, i32) {
    %c0_i32 = arith.constant 0 : i32
    %c0_i32_0 = arith.constant 0 : i32
    %c0_i32_1 = arith.constant 0 : i32
    return %c0_i32, %c0_i32_0 : i32, i32
  }
  func.func @transform_2(%arg0: i32) -> (i32, i32) {
    %c0_i32 = arith.constant 0 : i32
    %c0_i32_0 = arith.constant 0 : i32
    %c0_i32_1 = arith.constant 0 : i32
    return %c0_i32, %c0_i32_0 : i32, i32
  }
  func.func @transform_3(%arg0: i32) -> (i32, i32) {
    %c0_i32 = arith.constant 0 : i32
    %c0_i32_0 = arith.constant 0 : i32
    %c0_i32_1 = arith.constant 0 : i32
    return %c0_i32, %c0_i32_0 : i32, i32
  }
  func.func @transform_4(%arg0: i32) -> (i32, i32) {
    %c0_i32 = arith.constant 0 : i32
    %c0_i32_0 = arith.constant 0 : i32
    %c0_i32_1 = arith.constant 0 : i32
    return %c0_i32, %c0_i32_0 : i32, i32
  }
  func.func @transform_5(%arg0: i32) -> (i32, i32) {
    %c0_i32 = arith.constant 0 : i32
    %c0_i32_0 = arith.constant 0 : i32
    return %arg0, %c0_i32 : i32, i32
  }
}

</mosaic_0001>

<llo_original>
// kernel: forward_input_update_nn.1
$region0: #{forward_input_update_nn.1}
  #allocation0 [shape = 'u32[]', space=smem, size = 0x4, offset = 0x4, fixed_abs, tag = 'smem constant byte address 0x4 - core index']
  #allocation1 [shape = 'u32[72,128]{1,0:T(1,128)}', space=vmem, size = 0x9000, scoped, tag = 'internal scratch']
  %s0 = inlined_call_operand.vmem [shape: f32[18,256], index: 0, kind: input, shape index: {}]
  %s1 = inlined_call_operand.vmem [shape: f32[256,512], index: 1, kind: input, shape index: {}]
  %s2 = inlined_call_operand.vmem [shape: f32[1,512], index: 2, kind: input, shape index: {}]
  %s3 = inlined_call_operand.vmem [shape: f32[512,128], index: 3, kind: input, shape index: {}]
  %s4 = inlined_call_operand.vmem [shape: f32[1,128], index: 4, kind: input, shape index: {}]
  %s5 = inlined_call_operand.vmem [shape: f32[18,128], index: 5, kind: output, shape index: {}]
  %s6 = sld [smem:[#allocation0]]
  $region53: #{forward_input_update_nn.1} parent=0
    _
  %s8 = ssub.s32 1, %s6
  %s9 = scalar_select 0, %s8, %s6
  loop: start=0, step=1, limit=5
  $region2: #{forward_input_update_nn.1} parent=0 // loop_pre_header
    _
  $region3: #{forward_input_update_nn.1} parent=0 // loop_header
    %s11 = sphi 0, %s15
    %p12 = scmp.ge.s32.totalorder %s11, 5
    %s21 = sphi 0, %s23
    %s24 = sphi 0, %s21
    %s25 = sphi 0, %s24
    %s41 = sphi 0, %s25
    %s45 = sphi 0, %s45
    %s47 = sphi 0, %s45
    %s48 = sphi 0, %s47
    %s62 = sphi 0, %s48
    %s66 = sphi 0, %s66
    %s68 = sphi 0, %s66
    %s69 = sphi 0, %s68
    %s83 = sphi 0, %s69
    %s87 = sphi 0, %s87
    %s89 = sphi 0, %s87
    %s90 = sphi 0, %s89
    %s104 = sphi 0, %s90
    %s108 = sphi 0, %s108
    %s110 = sphi 0, %s108
    %s111 = sphi 0, %s110
    %s125 = sphi 0, %s111
    %s131 = sphi 0, %s133
    %s134 = sphi 0, %s131
    %s135 = sphi 0, %s134
    %s151 = sphi 0, %s135
  $region4: #{forward_input_update_nn.1} parent=0 // loop_header_branch
    %14 = sbr.rel (%p12) target = $region8
  $region5: #{forward_input_update_nn.1} parent=0 // loop_body
    %s16 = ssub.s32 %s11, 1
    %s17 = ssub.s32 %s11, 2
    %s18 = sadd.s32 %s11, 1
    %s19 = ssub.s32 %s11, %s18
    %p20 = scmp.eq.s32.totalorder %s19, 0
    %s22 = sadd.s32 %s21, 1
    %s23 = scalar_select %p20, %s21, %s22
    %p26 = pneg %p20
    %p27 = scmp.eq.s32.totalorder %s11, 2
    %p28 = por %p26, %p27
    %p29 = scmp.ne.s32.totalorder %s21, %s24
    %p30 = scmp.eq.s32.totalorder %s11, 0
    %p31 = por %p29, %p30
    %p32 = scmp.ne.s32.totalorder %s21, %s24
    %p33 = scmp.eq.s32.totalorder %s16, 2
    %p34 = por %p32, %p33
    %p35 = scmp.ne.s32.totalorder %s24, %s25
    %p36 = scmp.eq.s32.totalorder %s16, 0
    %p37 = por %p35, %p36
    %p38 = scmp.ne.s32.totalorder %s24, %s25
    %p39 = scmp.eq.s32.totalorder %s17, 2
    %p40 = por %p38, %p39
    %p42 = scmp.ne.s32.totalorder %s25, %s41
    %p43 = scmp.eq.s32.totalorder %s17, 0
    %p44 = por %p42, %p43
    %s46 = sadd.s32 %s45, 1
    %p49 = scmp.eq.s32.totalorder %s11, 2
    %p50 = scmp.ne.s32.totalorder %s45, %s47
    %p51 = scmp.eq.s32.totalorder %s11, 0
    %p52 = por %p50, %p51
    %p53 = scmp.ne.s32.totalorder %s45, %s47
    %p54 = scmp.eq.s32.totalorder %s16, 2
    %p55 = por %p53, %p54
    %p56 = scmp.ne.s32.totalorder %s47, %s48
    %p57 = scmp.eq.s32.totalorder %s16, 0
    %p58 = por %p56, %p57
    %p59 = scmp.ne.s32.totalorder %s47, %s48
    %p60 = scmp.eq.s32.totalorder %s17, 2
    %p61 = por %p59, %p60
    %p63 = scmp.ne.s32.totalorder %s48, %s62
    %p64 = scmp.eq.s32.totalorder %s17, 0
    %p65 = por %p63, %p64
    %s67 = sadd.s32 %s66, 1
    %p70 = scmp.eq.s32.totalorder %s11, 2
    %p71 = scmp.ne.s32.totalorder %s66, %s68
    %p72 = scmp.eq.s32.totalorder %s11, 0
    %p73 = por %p71, %p72
    %p74 = scmp.ne.s32.totalorder %s66, %s68
    %p75 = scmp.eq.s32.totalorder %s16, 2
    %p76 = por %p74, %p75
    %p77 = scmp.ne.s32.totalorder %s68, %s69
    %p78 = scmp.eq.s32.totalorder %s16, 0
    %p79 = por %p77, %p78
    %p80 = scmp.ne.s32.totalorder %s68, %s69
    %p81 = scmp.eq.s32.totalorder %s17, 2
    %p82 = por %p80, %p81
    %p84 = scmp.ne.s32.totalorder %s69, %s83
    %p85 = scmp.eq.s32.totalorder %s17, 0
    %p86 = por %p84, %p85
    %s88 = sadd.s32 %s87, 1
    %p91 = scmp.eq.s32.totalorder %s11, 2
    %p92 = scmp.ne.s32.totalorder %s87, %s89
    %p93 = scmp.eq.s32.totalorder %s11, 0
    %p94 = por %p92, %p93
    %p95 = scmp.ne.s32.totalorder %s87, %s89
    %p96 = scmp.eq.s32.totalorder %s16, 2
    %p97 = por %p95, %p96
    %p98 = scmp.ne.s32.totalorder %s89, %s90
    %p99 = scmp.eq.s32.totalorder %s16, 0
    %p100 = por %p98, %p99
    %p101 = scmp.ne.s32.totalorder %s89, %s90
    %p102 = scmp.eq.s32.totalorder %s17, 2
    %p103 = por %p101, %p102
    %p105 = scmp.ne.s32.totalorder %s90, %s104
    %p106 = scmp.eq.s32.totalorder %s17, 0
    %p107 = por %p105, %p106
    %s109 = sadd.s32 %s108, 1
    %p112 = scmp.eq.s32.totalorder %s11, 2
    %p113 = scmp.ne.s32.totalorder %s108, %s110
    %p114 = scmp.eq.s32.totalorder %s11, 0
    %p115 = por %p113, %p114
    %p116 = scmp.ne.s32.totalorder %s108, %s110
    %p117 = scmp.eq.s32.totalorder %s16, 2
    %p118 = por %p116, %p117
    %p119 = scmp.ne.s32.totalorder %s110, %s111
    %p120 = scmp.eq.s32.totalorder %s16, 0
    %p121 = por %p119, %p120
    %p122 = scmp.ne.s32.totalorder %s110, %s111
    %p123 = scmp.eq.s32.totalorder %s17, 2
    %p124 = por %p122, %p123
    %p126 = scmp.ne.s32.totalorder %s111, %s125
    %p127 = scmp.eq.s32.totalorder %s17, 0
    %p128 = por %p126, %p127
    %s129 = ssub.s32 %s11, %s18
    %p130 = scmp.eq.s32.totalorder %s129, 0
    %s132 = sadd.s32 %s131, 1
    %s133 = scalar_select %p130, %s131, %s132
    %p136 = pneg %p130
    %p137 = scmp.eq.s32.totalorder %s11, 2
    %p138 = por %p136, %p137
    %p139 = scmp.ne.s32.totalorder %s131, %s134
    %p140 = scmp.eq.s32.totalorder %s11, 0
    %p141 = por %p139, %p140
    %p142 = scmp.ne.s32.totalorder %s131, %s134
    %p143 = scmp.eq.s32.totalorder %s16, 2
    %p144 = por %p142, %p143
    %p145 = scmp.ne.s32.totalorder %s134, %s135
    %p146 = scmp.eq.s32.totalorder %s16, 0
    %p147 = por %p145, %p146
    %p148 = scmp.ne.s32.totalorder %s134, %s135
    %p149 = scmp.eq.s32.totalorder %s17, 2
    %p150 = por %p148, %p149
    %p152 = scmp.ne.s32.totalorder %s135, %s151
    %p153 = scmp.eq.s32.totalorder %s17, 0
    %p154 = por %p152, %p153
    %p155 = scmp.le.s32.totalorder 1, %s11
    %p156 = scmp.lt.s32.totalorder %s11, 4
    %p157 = pnand %p155, %p156
    %p158 = pneg %p157
    // Predicated region
    $region9: #{forward_input_update_nn.1} parent=5 // pred_check
      _
    $region10: #{forward_input_update_nn.1} parent=5 // pred_check_branch
      %160 = sbr.rel (%p157) target = $region12
    $region11: #{forward_input_update_nn.1} parent=5 // pred_region
      %s161 = ssub.s32 %s11, 1
      // Predicated region
      $region13: #{forward_input_update_nn.1} parent=11 // pred_check
        %p162 = pneg %p58
      $region14: #{forward_input_update_nn.1} parent=11 // pred_check_branch
        %164 = sbr.rel (%p162) target = $region16
      $region15: #{forward_input_update_nn.1} parent=11 // pred_region
        _
      $region16: #{forward_input_update_nn.1} parent=11 // pred_fallthru
        _
      // Predicated region
      $region17: #{forward_input_update_nn.1} parent=11 // pred_check
        %p165 = pneg %p79
      $region18: #{forward_input_update_nn.1} parent=11 // pred_check_branch
        %167 = sbr.rel (%p165) target = $region20
      $region19: #{forward_input_update_nn.1} parent=11 // pred_region
        _
      $region20: #{forward_input_update_nn.1} parent=11 // pred_fallthru
        _
      // Predicated region
      $region21: #{forward_input_update_nn.1} parent=11 // pred_check
        %p168 = pneg %p100
      $region22: #{forward_input_update_nn.1} parent=11 // pred_check_branch
        %170 = sbr.rel (%p168) target = $region24
      $region23: #{forward_input_update_nn.1} parent=11 // pred_region
        _
      $region24: #{forward_input_update_nn.1} parent=11 // pred_fallthru
        _
      // Predicated region
      $region25: #{forward_input_update_nn.1} parent=11 // pred_check
        %p171 = pneg %p121
      $region26: #{forward_input_update_nn.1} parent=11 // pred_check_branch
        %173 = sbr.rel (%p171) target = $region28
      $region27: #{forward_input_update_nn.1} parent=11 // pred_region
        _
      $region28: #{forward_input_update_nn.1} parent=11 // pred_fallthru
        _
    $region12: #{forward_input_update_nn.1} parent=5 // pred_fallthru
      _
    %p174 = scmp.lt.s32.totalorder %s11, 3
    // Predicated region
    $region29: #{forward_input_update_nn.1} parent=5 // pred_check
      %p175 = pneg %p174
    $region30: #{forward_input_update_nn.1} parent=5 // pred_check_branch
      %177 = sbr.rel (%p175) target = $region32
    $region31: #{forward_input_update_nn.1} parent=5 // pred_region
      // Predicated region
      $region33: #{forward_input_update_nn.1} parent=31 // pred_check
        %p178 = pneg %p31
      $region34: #{forward_input_update_nn.1} parent=31 // pred_check_branch
        %180 = sbr.rel (%p178) target = $region36
      $region35: #{forward_input_update_nn.1} parent=31 // pred_region
        %p181 = scmp.lt.s32.totalorder %s11, 2
        %s182 = scalar_select %p181, %s11, 2
        %s183 = smul.addr %s182, 2
        %s184 = smul.addr %s183, 8
        %s185 = scalar_lea.vmem %s0, %s184
      $region36: #{forward_input_update_nn.1} parent=31 // pred_fallthru
        _
    $region32: #{forward_input_update_nn.1} parent=5 // pred_fallthru
      _
    %p186 = scmp.le.s32.totalorder 1, %s11
    %p187 = scmp.lt.s32.totalorder %s11, 4
    %p188 = pnand %p186, %p187
    %p189 = pneg %p188
    // Predicated region
    $region37: #{forward_input_update_nn.1} parent=5 // pred_check
      _
    $region38: #{forward_input_update_nn.1} parent=5 // pred_check_branch
      %191 = sbr.rel (%p188) target = $region40
    $region39: #{forward_input_update_nn.1} parent=5 // pred_region
      %s192 = ssub.s32 %s11, 1
      %p193 = scmp.lt.s32.totalorder %s16, 2
      %s194 = scalar_select %p193, %s16, 2
      %s195 = smul.addr %s194, 2
      %s196 = smul.addr %s195, 8
      %s197 = scalar_lea.vmem %s0, %s196
      %p198 = pneg %p37
      %p199 = pneg %p34
      %p200 = pneg %p58
      %p201 = pneg %p55
      %p202 = pneg %p79
      %p203 = pneg %p76
      %p204 = pneg %p100
      %p205 = pneg %p97
      %p206 = pneg %p121
      %p207 = pneg %p118
      %p208 = pneg %p147
      %p209 = pneg %p144
      %p210 = scmp.lt.s32.totalorder %s16, 2
      %s211 = scalar_select %p210, %s16, 2
      %s212 = smul.addr %s211, 8
      %s213 = scalar_lea.vmem %s5, %s212
      %p214 = scmp.lt.s32.totalorder %s16, 2
      %s215 = scalar_select %p214, %s16, 2
      %s216 = smul.addr %s215, 2
      %s217 = smul.addr %s216, 8
      %s218 = scalar_lea.vmem %s0, %s217
      %p219 = scmp.lt.s32.totalorder %s16, 2
      %s220 = scalar_select %p219, %s16, 2
      %s221 = smul.addr %s220, 8
      %s222 = scalar_lea.vmem %s5, %s221
      %v223 = vld [vmem:[%s218] sm:$0xff]
      %v224 = vld [vmem:[%s218 + $0x8] sm:$0xff]
      %v225 = vld [vmem:[%s1] sm:$0xff]
      %v226 = vld [vmem:[%s1 + $0x8] sm:$0xff]
      %v227 = vld [vmem:[%s1 + $0x10] sm:$0xff]
      %v228 = vld [vmem:[%s1 + $0x18] sm:$0xff]
      %v229 = vld [vmem:[%s1 + $0x20] sm:$0xff]
      %v230 = vld [vmem:[%s1 + $0x28] sm:$0xff]
      %v231 = vld [vmem:[%s1 + $0x30] sm:$0xff]
      %v232 = vld [vmem:[%s1 + $0x38] sm:$0xff]
      %v233 = vld [vmem:[%s1 + $0x40] sm:$0xff]
      %v234 = vld [vmem:[%s1 + $0x48] sm:$0xff]
      %v235 = vld [vmem:[%s1 + $0x50] sm:$0xff]
      %v236 = vld [vmem:[%s1 + $0x58] sm:$0xff]
      %v237 = vld [vmem:[%s1 + $0x60] sm:$0xff]
      %v238 = vld [vmem:[%s1 + $0x68] sm:$0xff]
      %v239 = vld [vmem:[%s1 + $0x70] sm:$0xff]
      %v240 = vld [vmem:[%s1 + $0x78] sm:$0xff]
      %v241 = vld [vmem:[%s1 + $0x80] sm:$0xff]
      %v242 = vld [vmem:[%s1 + $0x88] sm:$0xff]
      %v243 = vld [vmem:[%s1 + $0x90] sm:$0xff]
      %v244 = vld [vmem:[%s1 + $0x98] sm:$0xff]
      %v245 = vld [vmem:[%s1 + $0xa0] sm:$0xff]
      %v246 = vld [vmem:[%s1 + $0xa8] sm:$0xff]
      %v247 = vld [vmem:[%s1 + $0xb0] sm:$0xff]
      %v248 = vld [vmem:[%s1 + $0xb8] sm:$0xff]
      %v249 = vld [vmem:[%s1 + $0xc0] sm:$0xff]
      %v250 = vld [vmem:[%s1 + $0xc8] sm:$0xff]
      %v251 = vld [vmem:[%s1 + $0xd0] sm:$0xff]
      %v252 = vld [vmem:[%s1 + $0xd8] sm:$0xff]
      %v253 = vld [vmem:[%s1 + $0xe0] sm:$0xff]
      %v254 = vld [vmem:[%s1 + $0xe8] sm:$0xff]
      %v255 = vld [vmem:[%s1 + $0xf0] sm:$0xff]
      %v256 = vld [vmem:[%s1 + $0xf8] sm:$0xff]
      %v257 = vld [vmem:[%s1 + $0x100] sm:$0xff]
      %v258 = vld [vmem:[%s1 + $0x108] sm:$0xff]
      %v259 = vld [vmem:[%s1 + $0x110] sm:$0xff]
      %v260 = vld [vmem:[%s1 + $0x118] sm:$0xff]
      %v261 = vld [vmem:[%s1 + $0x120] sm:$0xff]
      %v262 = vld [vmem:[%s1 + $0x128] sm:$0xff]
      %v263 = vld [vmem:[%s1 + $0x130] sm:$0xff]
      %v264 = vld [vmem:[%s1 + $0x138] sm:$0xff]
      %v265 = vld [vmem:[%s1 + $0x140] sm:$0xff]
      %v266 = vld [vmem:[%s1 + $0x148] sm:$0xff]
      %v267 = vld [vmem:[%s1 + $0x150] sm:$0xff]
      %v268 = vld [vmem:[%s1 + $0x158] sm:$0xff]
      %v269 = vld [vmem:[%s1 + $0x160] sm:$0xff]
      %v270 = vld [vmem:[%s1 + $0x168] sm:$0xff]
      %v271 = vld [vmem:[%s1 + $0x170] sm:$0xff]
      %v272 = vld [vmem:[%s1 + $0x178] sm:$0xff]
      %v273 = vld [vmem:[%s1 + $0x180] sm:$0xff]
      %v274 = vld [vmem:[%s1 + $0x188] sm:$0xff]
      %v275 = vld [vmem:[%s1 + $0x190] sm:$0xff]
      %v276 = vld [vmem:[%s1 + $0x198] sm:$0xff]
      %v277 = vld [vmem:[%s1 + $0x1a0] sm:$0xff]
      %v278 = vld [vmem:[%s1 + $0x1a8] sm:$0xff]
      %v279 = vld [vmem:[%s1 + $0x1b0] sm:$0xff]
      %v280 = vld [vmem:[%s1 + $0x1b8] sm:$0xff]
      %v281 = vld [vmem:[%s1 + $0x1c0] sm:$0xff]
      %v282 = vld [vmem:[%s1 + $0x1c8] sm:$0xff]
      %v283 = vld [vmem:[%s1 + $0x1d0] sm:$0xff]
      %v284 = vld [vmem:[%s1 + $0x1d8] sm:$0xff]
      %v285 = vld [vmem:[%s1 + $0x1e0] sm:$0xff]
      %v286 = vld [vmem:[%s1 + $0x1e8] sm:$0xff]
      %v287 = vld [vmem:[%s1 + $0x1f0] sm:$0xff]
      %v288 = vld [vmem:[%s1 + $0x1f8] sm:$0xff]
      %v289 = vld [vmem:[%s1 + $0x200] sm:$0xff]
      %v290 = vld [vmem:[%s1 + $0x208] sm:$0xff]
      %v291 = vld [vmem:[%s1 + $0x210] sm:$0xff]
      %v292 = vld [vmem:[%s1 + $0x218] sm:$0xff]
      %v293 = vld [vmem:[%s1 + $0x220] sm:$0xff]
      %v294 = vld [vmem:[%s1 + $0x228] sm:$0xff]
      %v295 = vld [vmem:[%s1 + $0x230] sm:$0xff]
      %v296 = vld [vmem:[%s1 + $0x238] sm:$0xff]
      %v297 = vld [vmem:[%s1 + $0x240] sm:$0xff]
      %v298 = vld [vmem:[%s1 + $0x248] sm:$0xff]
      %v299 = vld [vmem:[%s1 + $0x250] sm:$0xff]
      %v300 = vld [vmem:[%s1 + $0x258] sm:$0xff]
      %v301 = vld [vmem:[%s1 + $0x260] sm:$0xff]
      %v302 = vld [vmem:[%s1 + $0x268] sm:$0xff]
      %v303 = vld [vmem:[%s1 + $0x270] sm:$0xff]
      %v304 = vld [vmem:[%s1 + $0x278] sm:$0xff]
      %v305 = vld [vmem:[%s1 + $0x280] sm:$0xff]
      %v306 = vld [vmem:[%s1 + $0x288] sm:$0xff]
      %v307 = vld [vmem:[%s1 + $0x290] sm:$0xff]
      %v308 = vld [vmem:[%s1 + $0x298] sm:$0xff]
      %v309 = vld [vmem:[%s1 + $0x2a0] sm:$0xff]
      %v310 = vld [vmem:[%s1 + $0x2a8] sm:$0xff]
      %v311 = vld [vmem:[%s1 + $0x2b0] sm:$0xff]
      %v312 = vld [vmem:[%s1 + $0x2b8] sm:$0xff]
      %v313 = vld [vmem:[%s1 + $0x2c0] sm:$0xff]
      %v314 = vld [vmem:[%s1 + $0x2c8] sm:$0xff]
      %v315 = vld [vmem:[%s1 + $0x2d0] sm:$0xff]
      %v316 = vld [vmem:[%s1 + $0x2d8] sm:$0xff]
      %v317 = vld [vmem:[%s1 + $0x2e0] sm:$0xff]
      %v318 = vld [vmem:[%s1 + $0x2e8] sm:$0xff]
      %v319 = vld [vmem:[%s1 + $0x2f0] sm:$0xff]
      %v320 = vld [vmem:[%s1 + $0x2f8] sm:$0xff]
      %v321 = vld [vmem:[%s1 + $0x300] sm:$0xff]
      %v322 = vld [vmem:[%s1 + $0x308] sm:$0xff]
      %v323 = vld [vmem:[%s1 + $0x310] sm:$0xff]
      %v324 = vld [vmem:[%s1 + $0x318] sm:$0xff]
      %v325 = vld [vmem:[%s1 + $0x320] sm:$0xff]
      %v326 = vld [vmem:[%s1 + $0x328] sm:$0xff]
      %v327 = vld [vmem:[%s1 + $0x330] sm:$0xff]
      %v328 = vld [vmem:[%s1 + $0x338] sm:$0xff]
      %v329 = vld [vmem:[%s1 + $0x340] sm:$0xff]
      %v330 = vld [vmem:[%s1 + $0x348] sm:$0xff]
      %v331 = vld [vmem:[%s1 + $0x350] sm:$0xff]
      %v332 = vld [vmem:[%s1 + $0x358] sm:$0xff]
      %v333 = vld [vmem:[%s1 + $0x360] sm:$0xff]
      %v334 = vld [vmem:[%s1 + $0x368] sm:$0xff]
      %v335 = vld [vmem:[%s1 + $0x370] sm:$0xff]
      %v336 = vld [vmem:[%s1 + $0x378] sm:$0xff]
      %v337 = vld [vmem:[%s1 + $0x380] sm:$0xff]
      %v338 = vld [vmem:[%s1 + $0x388] sm:$0xff]
      %v339 = vld [vmem:[%s1 + $0x390] sm:$0xff]
      %v340 = vld [vmem:[%s1 + $0x398] sm:$0xff]
      %v341 = vld [vmem:[%s1 + $0x3a0] sm:$0xff]
      %v342 = vld [vmem:[%s1 + $0x3a8] sm:$0xff]
      %v343 = vld [vmem:[%s1 + $0x3b0] sm:$0xff]
      %v344 = vld [vmem:[%s1 + $0x3b8] sm:$0xff]
      %v345 = vld [vmem:[%s1 + $0x3c0] sm:$0xff]
      %v346 = vld [vmem:[%s1 + $0x3c8] sm:$0xff]
      %v347 = vld [vmem:[%s1 + $0x3d0] sm:$0xff]
      %v348 = vld [vmem:[%s1 + $0x3d8] sm:$0xff]
      %v349 = vld [vmem:[%s1 + $0x3e0] sm:$0xff]
      %v350 = vld [vmem:[%s1 + $0x3e8] sm:$0xff]
      %v351 = vld [vmem:[%s1 + $0x3f0] sm:$0xff]
      %v352 = vld [vmem:[%s1 + $0x3f8] sm:$0xff]
      %v353 = vld [vmem:[%s2] sm:$0xf]
      %v355 = vperm.slane %v353, 0
      %v356 = vperm.slane %v353, 1
      %v357 = vperm.slane %v353, 2
      %v358 = vperm.slane %v353, 3
      %363 = vmatpush.msra.mxu0 %v285
      %364 = vmatpush.msra.mxu0 %v281
      %365 = vmatpush.msra.mxu0 %v277
      %366 = vmatpush.msra.mxu0 %v273
      %367 = vmatpush.msra.mxu0 %v269
      %368 = vmatpush.msra.mxu0 %v265
      %369 = vmatpush.msra.mxu0 %v261
      %370 = vmatpush.msra.mxu0 %v257
      %371 = vmatpush.msra.mxu0 %v253
      %372 = vmatpush.msra.mxu0 %v249
      %373 = vmatpush.msra.mxu0 %v245
      %374 = vmatpush.msra.mxu0 %v241
      %375 = vmatpush.msra.mxu0 %v237
      %376 = vmatpush.msra.mxu0 %v233
      %377 = vmatpush.msra.mxu0 %v229
      %378 = vmatpush.msra.mxu0 %v225
      %379 = vmatmul.f32.gmra.mxu0 %v223
      %v380 = vpop.f32.mrf.mxu0
      %v381 = vadd.f32 %v355, %v380
      %382 = vdwg.mxu0
      %383 = vmatpush.msra.mxu0 %v349
      %384 = vmatpush.msra.mxu0 %v345
      %385 = vmatpush.msra.mxu0 %v341
      %386 = vmatpush.msra.mxu0 %v337
      %387 = vmatpush.msra.mxu0 %v333
      %388 = vmatpush.msra.mxu0 %v329
      %389 = vmatpush.msra.mxu0 %v325
      %390 = vmatpush.msra.mxu0 %v321
      %391 = vmatpush.msra.mxu0 %v317
      %392 = vmatpush.msra.mxu0 %v313
      %393 = vmatpush.msra.mxu0 %v309
      %394 = vmatpush.msra.mxu0 %v305
      %395 = vmatpush.msra.mxu0 %v301
      %396 = vmatpush.msra.mxu0 %v297
      %397 = vmatpush.msra.mxu0 %v293
      %398 = vmatpush.msra.mxu0 %v289
      %399 = vmatmul.f32.gmra.mxu0 %v224
      %v400 = vpop.f32.mrf.mxu0
      %v401 = vadd.f32 %v381, %v400
      %402 = vdwg.mxu0
      %403 = vmatpush.msra.mxu0 %v286
      %404 = vmatpush.msra.mxu0 %v282
      %405 = vmatpush.msra.mxu0 %v278
      %406 = vmatpush.msra.mxu0 %v274
      %407 = vmatpush.msra.mxu0 %v270
      %408 = vmatpush.msra.mxu0 %v266
      %409 = vmatpush.msra.mxu0 %v262
      %410 = vmatpush.msra.mxu0 %v258
      %411 = vmatpush.msra.mxu0 %v254
      %412 = vmatpush.msra.mxu0 %v250
      %413 = vmatpush.msra.mxu0 %v246
      %414 = vmatpush.msra.mxu0 %v242
      %415 = vmatpush.msra.mxu0 %v238
      %416 = vmatpush.msra.mxu0 %v234
      %417 = vmatpush.msra.mxu0 %v230
      %418 = vmatpush.msra.mxu0 %v226
      %419 = vmatmul.f32.gmra.mxu0 %v223
      %v420 = vpop.f32.mrf.mxu0
      %v421 = vadd.f32 %v356, %v420
      %422 = vdwg.mxu0
      %423 = vmatpush.msra.mxu0 %v350
      %424 = vmatpush.msra.mxu0 %v346
      %425 = vmatpush.msra.mxu0 %v342
      %426 = vmatpush.msra.mxu0 %v338
      %427 = vmatpush.msra.mxu0 %v334
      %428 = vmatpush.msra.mxu0 %v330
      %429 = vmatpush.msra.mxu0 %v326
      %430 = vmatpush.msra.mxu0 %v322
      %431 = vmatpush.msra.mxu0 %v318
      %432 = vmatpush.msra.mxu0 %v314
      %433 = vmatpush.msra.mxu0 %v310
      %434 = vmatpush.msra.mxu0 %v306
      %435 = vmatpush.msra.mxu0 %v302
      %436 = vmatpush.msra.mxu0 %v298
      %437 = vmatpush.msra.mxu0 %v294
      %438 = vmatpush.msra.mxu0 %v290
      %439 = vmatmul.f32.gmra.mxu0 %v224
      %v440 = vpop.f32.mrf.mxu0
      %v441 = vadd.f32 %v421, %v440
      %442 = vdwg.mxu0
      %443 = vmatpush.msra.mxu0 %v287
      %444 = vmatpush.msra.mxu0 %v283
      %445 = vmatpush.msra.mxu0 %v279
      %446 = vmatpush.msra.mxu0 %v275
      %447 = vmatpush.msra.mxu0 %v271
      %448 = vmatpush.msra.mxu0 %v267
      %449 = vmatpush.msra.mxu0 %v263
      %450 = vmatpush.msra.mxu0 %v259
      %451 = vmatpush.msra.mxu0 %v255
      %452 = vmatpush.msra.mxu0 %v251
      %453 = vmatpush.msra.mxu0 %v247
      %454 = vmatpush.msra.mxu0 %v243
      %455 = vmatpush.msra.mxu0 %v239
      %456 = vmatpush.msra.mxu0 %v235
      %457 = vmatpush.msra.mxu0 %v231
      %458 = vmatpush.msra.mxu0 %v227
      %459 = vmatmul.f32.gmra.mxu0 %v223
      %v460 = vpop.f32.mrf.mxu0
      %v461 = vadd.f32 %v357, %v460
      %462 = vdwg.mxu0
      %463 = vmatpush.msra.mxu0 %v351
      %464 = vmatpush.msra.mxu0 %v347
      %465 = vmatpush.msra.mxu0 %v343
      %466 = vmatpush.msra.mxu0 %v339
      %467 = vmatpush.msra.mxu0 %v335
      %468 = vmatpush.msra.mxu0 %v331
      %469 = vmatpush.msra.mxu0 %v327
      %470 = vmatpush.msra.mxu0 %v323
      %471 = vmatpush.msra.mxu0 %v319
      %472 = vmatpush.msra.mxu0 %v315
      %473 = vmatpush.msra.mxu0 %v311
      %474 = vmatpush.msra.mxu0 %v307
      %475 = vmatpush.msra.mxu0 %v303
      %476 = vmatpush.msra.mxu0 %v299
      %477 = vmatpush.msra.mxu0 %v295
      %478 = vmatpush.msra.mxu0 %v291
      %479 = vmatmul.f32.gmra.mxu0 %v224
      %v480 = vpop.f32.mrf.mxu0
      %v481 = vadd.f32 %v461, %v480
      %482 = vdwg.mxu0
      %483 = vmatpush.msra.mxu0 %v288
      %484 = vmatpush.msra.mxu0 %v284
      %485 = vmatpush.msra.mxu0 %v280
      %486 = vmatpush.msra.mxu0 %v276
      %487 = vmatpush.msra.mxu0 %v272
      %488 = vmatpush.msra.mxu0 %v268
      %489 = vmatpush.msra.mxu0 %v264
      %490 = vmatpush.msra.mxu0 %v260
      %491 = vmatpush.msra.mxu0 %v256
      %492 = vmatpush.msra.mxu0 %v252
      %493 = vmatpush.msra.mxu0 %v248
      %494 = vmatpush.msra.mxu0 %v244
      %495 = vmatpush.msra.mxu0 %v240
      %496 = vmatpush.msra.mxu0 %v236
      %497 = vmatpush.msra.mxu0 %v232
      %498 = vmatpush.msra.mxu0 %v228
      %499 = vmatmul.f32.gmra.mxu0 %v223
      %v500 = vpop.f32.mrf.mxu0
      %v501 = vadd.f32 %v358, %v500
      %502 = vdwg.mxu0
      %503 = vmatpush.msra.mxu0 %v352
      %504 = vmatpush.msra.mxu0 %v348
      %505 = vmatpush.msra.mxu0 %v344
      %506 = vmatpush.msra.mxu0 %v340
      %507 = vmatpush.msra.mxu0 %v336
      %508 = vmatpush.msra.mxu0 %v332
      %509 = vmatpush.msra.mxu0 %v328
      %510 = vmatpush.msra.mxu0 %v324
      %511 = vmatpush.msra.mxu0 %v320
      %512 = vmatpush.msra.mxu0 %v316
      %513 = vmatpush.msra.mxu0 %v312
      %514 = vmatpush.msra.mxu0 %v308
      %515 = vmatpush.msra.mxu0 %v304
      %516 = vmatpush.msra.mxu0 %v300
      %517 = vmatpush.msra.mxu0 %v296
      %518 = vmatpush.msra.mxu0 %v292
      %519 = vmatmul.f32.gmra.mxu0 %v224
      %v520 = vpop.f32.mrf.mxu0
      %v521 = vadd.f32 %v501, %v520
      %522 = vdwg.mxu0
      %v523 = vmax.f32 %v401, 0.0
      %v524 = vmax.f32 %v441, 0.0
      %v525 = vmax.f32 %v481, 0.0
      %v526 = vmax.f32 %v521, 0.0
      %v527 = vld [vmem:[%s3] sm:$0xff]
      %v528 = vld [vmem:[%s3 + $0x8] sm:$0xff]
      %v529 = vld [vmem:[%s3 + $0x10] sm:$0xff]
      %v530 = vld [vmem:[%s3 + $0x18] sm:$0xff]
      %v531 = vld [vmem:[%s3 + $0x20] sm:$0xff]
      %v532 = vld [vmem:[%s3 + $0x28] sm:$0xff]
      %v533 = vld [vmem:[%s3 + $0x30] sm:$0xff]
      %v534 = vld [vmem:[%s3 + $0x38] sm:$0xff]
      %v535 = vld [vmem:[%s3 + $0x40] sm:$0xff]
      %v536 = vld [vmem:[%s3 + $0x48] sm:$0xff]
      %v537 = vld [vmem:[%s3 + $0x50] sm:$0xff]
      %v538 = vld [vmem:[%s3 + $0x58] sm:$0xff]
      %v539 = vld [vmem:[%s3 + $0x60] sm:$0xff]
      %v540 = vld [vmem:[%s3 + $0x68] sm:$0xff]
      %v541 = vld [vmem:[%s3 + $0x70] sm:$0xff]
      %v542 = vld [vmem:[%s3 + $0x78] sm:$0xff]
      %v543 = vld [vmem:[%s3 + $0x80] sm:$0xff]
      %v544 = vld [vmem:[%s3 + $0x88] sm:$0xff]
      %v545 = vld [vmem:[%s3 + $0x90] sm:$0xff]
      %v546 = vld [vmem:[%s3 + $0x98] sm:$0xff]
      %v547 = vld [vmem:[%s3 + $0xa0] sm:$0xff]
      %v548 = vld [vmem:[%s3 + $0xa8] sm:$0xff]
      %v549 = vld [vmem:[%s3 + $0xb0] sm:$0xff]
      %v550 = vld [vmem:[%s3 + $0xb8] sm:$0xff]
      %v551 = vld [vmem:[%s3 + $0xc0] sm:$0xff]
      %v552 = vld [vmem:[%s3 + $0xc8] sm:$0xff]
      %v553 = vld [vmem:[%s3 + $0xd0] sm:$0xff]
      %v554 = vld [vmem:[%s3 + $0xd8] sm:$0xff]
      %v555 = vld [vmem:[%s3 + $0xe0] sm:$0xff]
      %v556 = vld [vmem:[%s3 + $0xe8] sm:$0xff]
      %v557 = vld [vmem:[%s3 + $0xf0] sm:$0xff]
      %v558 = vld [vmem:[%s3 + $0xf8] sm:$0xff]
      %v559 = vld [vmem:[%s3 + $0x100] sm:$0xff]
      %v560 = vld [vmem:[%s3 + $0x108] sm:$0xff]
      %v561 = vld [vmem:[%s3 + $0x110] sm:$0xff]
      %v562 = vld [vmem:[%s3 + $0x118] sm:$0xff]
      %v563 = vld [vmem:[%s3 + $0x120] sm:$0xff]
      %v564 = vld [vmem:[%s3 + $0x128] sm:$0xff]
      %v565 = vld [vmem:[%s3 + $0x130] sm:$0xff]
      %v566 = vld [vmem:[%s3 + $0x138] sm:$0xff]
      %v567 = vld [vmem:[%s3 + $0x140] sm:$0xff]
      %v568 = vld [vmem:[%s3 + $0x148] sm:$0xff]
      %v569 = vld [vmem:[%s3 + $0x150] sm:$0xff]
      %v570 = vld [vmem:[%s3 + $0x158] sm:$0xff]
      %v571 = vld [vmem:[%s3 + $0x160] sm:$0xff]
      %v572 = vld [vmem:[%s3 + $0x168] sm:$0xff]
      %v573 = vld [vmem:[%s3 + $0x170] sm:$0xff]
      %v574 = vld [vmem:[%s3 + $0x178] sm:$0xff]
      %v575 = vld [vmem:[%s3 + $0x180] sm:$0xff]
      %v576 = vld [vmem:[%s3 + $0x188] sm:$0xff]
      %v577 = vld [vmem:[%s3 + $0x190] sm:$0xff]
      %v578 = vld [vmem:[%s3 + $0x198] sm:$0xff]
      %v579 = vld [vmem:[%s3 + $0x1a0] sm:$0xff]
      %v580 = vld [vmem:[%s3 + $0x1a8] sm:$0xff]
      %v581 = vld [vmem:[%s3 + $0x1b0] sm:$0xff]
      %v582 = vld [vmem:[%s3 + $0x1b8] sm:$0xff]
      %v583 = vld [vmem:[%s3 + $0x1c0] sm:$0xff]
      %v584 = vld [vmem:[%s3 + $0x1c8] sm:$0xff]
      %v585 = vld [vmem:[%s3 + $0x1d0] sm:$0xff]
      %v586 = vld [vmem:[%s3 + $0x1d8] sm:$0xff]
      %v587 = vld [vmem:[%s3 + $0x1e0] sm:$0xff]
      %v588 = vld [vmem:[%s3 + $0x1e8] sm:$0xff]
      %v589 = vld [vmem:[%s3 + $0x1f0] sm:$0xff]
      %v590 = vld [vmem:[%s3 + $0x1f8] sm:$0xff]
      %v591 = vld [vmem:[%s4] sm:$0x1]
      %v593 = vperm.slane %v591, 0
      %595 = vmatpush.msra.mxu0 %v542
      %596 = vmatpush.msra.mxu0 %v541
      %597 = vmatpush.msra.mxu0 %v540
      %598 = vmatpush.msra.mxu0 %v539
      %599 = vmatpush.msra.mxu0 %v538
      %600 = vmatpush.msra.mxu0 %v537
      %601 = vmatpush.msra.mxu0 %v536
      %602 = vmatpush.msra.mxu0 %v535
      %603 = vmatpush.msra.mxu0 %v534
      %604 = vmatpush.msra.mxu0 %v533
      %605 = vmatpush.msra.mxu0 %v532
      %606 = vmatpush.msra.mxu0 %v531
      %607 = vmatpush.msra.mxu0 %v530
      %608 = vmatpush.msra.mxu0 %v529
      %609 = vmatpush.msra.mxu0 %v528
      %610 = vmatpush.msra.mxu0 %v527
      %611 = vmatmul.f32.gmra.mxu0 %v523
      %v612 = vpop.f32.mrf.mxu0
      %v613 = vadd.f32 %v593, %v612
      %614 = vdwg.mxu0
      %615 = vmatpush.msra.mxu0 %v558
      %616 = vmatpush.msra.mxu0 %v557
      %617 = vmatpush.msra.mxu0 %v556
      %618 = vmatpush.msra.mxu0 %v555
      %619 = vmatpush.msra.mxu0 %v554
      %620 = vmatpush.msra.mxu0 %v553
      %621 = vmatpush.msra.mxu0 %v552
      %622 = vmatpush.msra.mxu0 %v551
      %623 = vmatpush.msra.mxu0 %v550
      %624 = vmatpush.msra.mxu0 %v549
      %625 = vmatpush.msra.mxu0 %v548
      %626 = vmatpush.msra.mxu0 %v547
      %627 = vmatpush.msra.mxu0 %v546
      %628 = vmatpush.msra.mxu0 %v545
      %629 = vmatpush.msra.mxu0 %v544
      %630 = vmatpush.msra.mxu0 %v543
      %631 = vmatmul.f32.gmra.mxu0 %v524
      %v632 = vpop.f32.mrf.mxu0
      %v633 = vadd.f32 %v613, %v632
      %634 = vdwg.mxu0
      %635 = vmatpush.msra.mxu0 %v574
      %636 = vmatpush.msra.mxu0 %v573
      %637 = vmatpush.msra.mxu0 %v572
      %638 = vmatpush.msra.mxu0 %v571
      %639 = vmatpush.msra.mxu0 %v570
      %640 = vmatpush.msra.mxu0 %v569
      %641 = vmatpush.msra.mxu0 %v568
      %642 = vmatpush.msra.mxu0 %v567
      %643 = vmatpush.msra.mxu0 %v566
      %644 = vmatpush.msra.mxu0 %v565
      %645 = vmatpush.msra.mxu0 %v564
      %646 = vmatpush.msra.mxu0 %v563
      %647 = vmatpush.msra.mxu0 %v562
      %648 = vmatpush.msra.mxu0 %v561
      %649 = vmatpush.msra.mxu0 %v560
      %650 = vmatpush.msra.mxu0 %v559
      %651 = vmatmul.f32.gmra.mxu0 %v525
      %v652 = vpop.f32.mrf.mxu0
      %v653 = vadd.f32 %v633, %v652
      %654 = vdwg.mxu0
      %655 = vmatpush.msra.mxu0 %v590
      %656 = vmatpush.msra.mxu0 %v589
      %657 = vmatpush.msra.mxu0 %v588
      %658 = vmatpush.msra.mxu0 %v587
      %659 = vmatpush.msra.mxu0 %v586
      %660 = vmatpush.msra.mxu0 %v585
      %661 = vmatpush.msra.mxu0 %v584
      %662 = vmatpush.msra.mxu0 %v583
      %663 = vmatpush.msra.mxu0 %v582
      %664 = vmatpush.msra.mxu0 %v581
      %665 = vmatpush.msra.mxu0 %v580
      %666 = vmatpush.msra.mxu0 %v579
      %667 = vmatpush.msra.mxu0 %v578
      %668 = vmatpush.msra.mxu0 %v577
      %669 = vmatpush.msra.mxu0 %v576
      %670 = vmatpush.msra.mxu0 %v575
      %671 = vmatmul.f32.gmra.mxu0 %v526
      %v672 = vpop.f32.mrf.mxu0
      %v673 = vadd.f32 %v653, %v672
      %674 = vdwg.mxu0
      %675 = vst [vmem:[%s222] sm:$0xff] %v673
      %p676 = scmp.lt.s32.totalorder %s16, 2
      %s677 = scalar_select %p676, %s16, 2
      %s678 = smul.addr %s677, 8
      %s679 = scalar_lea.vmem %s5, %s678
      // Predicated region
      $region41: #{forward_input_update_nn.1} parent=39 // pred_check
        %p680 = pneg %p144
      $region42: #{forward_input_update_nn.1} parent=39 // pred_check_branch
        %682 = sbr.rel (%p680) target = $region44
      $region43: #{forward_input_update_nn.1} parent=39 // pred_region
        _
      $region44: #{forward_input_update_nn.1} parent=39 // pred_fallthru
        _
    $region40: #{forward_input_update_nn.1} parent=5 // pred_fallthru
      _
    %p683 = scmp.le.s32.totalorder 2, %s11
    // Predicated region
    $region45: #{forward_input_update_nn.1} parent=5 // pred_check
      %p684 = pneg %p683
    $region46: #{forward_input_update_nn.1} parent=5 // pred_check_branch
      %686 = sbr.rel (%p684) target = $region48
    $region47: #{forward_input_update_nn.1} parent=5 // pred_region
      %s687 = ssub.s32 %s11, 2
      // Predicated region
      $region49: #{forward_input_update_nn.1} parent=47 // pred_check
        %p688 = pneg %p150
      $region50: #{forward_input_update_nn.1} parent=47 // pred_check_branch
        %690 = sbr.rel (%p688) target = $region52
      $region51: #{forward_input_update_nn.1} parent=47 // pred_region
        %p691 = scmp.lt.s32.totalorder %s17, 2
        %s692 = scalar_select %p691, %s17, 2
        %s693 = smul.addr %s692, 8
        %s694 = scalar_lea.vmem %s5, %s693
      $region52: #{forward_input_update_nn.1} parent=47 // pred_fallthru
        _
    $region48: #{forward_input_update_nn.1} parent=5 // pred_fallthru
      _
  $region6: #{forward_input_update_nn.1} parent=0 // loop_footer
    %s15 = sadd.s32 1, %s11
  $region7: #{forward_input_update_nn.1} parent=0 // loop_footer_branch
    %10 = sbr.rel target = $region3
  $region8: #{forward_input_update_nn.1} parent=0 // loop_exit
    _

</llo_original>
